<compile_context>
chip_gen: v5e
topology: v5e:2x2
jax: 0.10.0
libtpu: 0.0.40
codegen_flags: <defaults>
</compile_context>

<pallas_src>
import jax
import jax.numpy as jnp
from jax.experimental import pallas as pl
from jax.experimental.pallas import tpu as pltpu

LANES = 128            # lane width of a vreg
SUBLANES = 8           # sublane depth of a vreg (f32)
MAX_BLOCK_ROWS = 1024  # (1024, 128) f32 = 512 KiB per buffer


def mlp_kernel(x_ref, w1_ref, b1_ref, w2_ref, b2_ref, o_ref):
    # x_ref : (block_rows, 128) f32 in VMEM -- batch relayouted onto
    #         (sublane, lane); each element is one independent sample.
    # w1_ref: (5,) f32 in SMEM   (fc1 weight, in_features == 1)
    # b1_ref: (5,) f32 in SMEM   (fc1 bias)
    # w2_ref: (5,) f32 in SMEM   (fc2 weight, out_features == 1)
    # b2_ref: (1,) f32 in SMEM   (fc2 bias)
    # o_ref : (block_rows, 128) f32 in VMEM
    x = x_ref[...]

    # 5 hidden units, statically unrolled: pure VPU FMA + max, no MXU/XLU.
    acc = None
    for j in range(5):
        h = jnp.maximum(x * w1_ref[j] + b1_ref[j], 0.0)   # fc1 + ReLU
        term = h * w2_ref[j]                               # fc2 partial
        acc = term if acc is None else acc + term

    o_ref[...] = (acc + b2_ref[0]).astype(o_ref.dtype)


def net_forward(x, w1, b1, w2, b2, *, max_block_rows=MAX_BLOCK_ROWS):
    """Forward pass of Net. x: (B, 1) f32 -> (B, 1) f32.

    Weights use the flattened layouts:
      w1: (5,) = fc1.weight[:, 0], b1: (5,), w2: (5,) = fc2.weight[0, :], b2: (1,).
    """
    B = x.shape[0]

    # --- Relayout: put batch on the lane axis, lane-dense (rows, 128). ---
    rows = pl.cdiv(B, LANES)
    rows = ((rows + SUBLANES - 1) // SUBLANES) * SUBLANES      # sublane align
    block_rows = min(rows, max_block_rows)
    rows = ((rows + block_rows - 1) // block_rows) * block_rows  # grid align
    padded = rows * LANES
    x2d = jnp.pad(x.reshape(-1), (0, padded - B)).reshape(rows, LANES)

    grid = (rows // block_rows,)

    y2d = pl.pallas_call(
        mlp_kernel,
        out_shape=jax.ShapeDtypeStruct((rows, LANES), jnp.float32),
        grid=grid,
        in_specs=[
            # Lane-dense activation blocks, double-buffered by the pipeline.
            pl.BlockSpec((block_rows, LANES), lambda i: (i, 0)),
            # 11 weight scalars: whole arrays in SMEM, no VMEM tile padding.
            pl.BlockSpec(memory_space=pltpu.SMEM),
            pl.BlockSpec(memory_space=pltpu.SMEM),
            pl.BlockSpec(memory_space=pltpu.SMEM),
            pl.BlockSpec(memory_space=pltpu.SMEM),
        ],
        out_specs=pl.BlockSpec((block_rows, LANES), lambda i: (i, 0)),
        compiler_params=pltpu.CompilerParams(
            dimension_semantics=("parallel",),  # v7x: shard batch over 2 TCs
        ),
    )(x2d, w1, b1, w2, b2)

    # Padded tail rows are computed but discarded here (outputs are 1:1 with
    # inputs, no accumulation, so no masking is needed inside the kernel).
    return y2d.reshape(-1)[:B].reshape(B, 1)


def init_params(key):
    # Deterministic init mimicking nn.Linear uniform(-1/sqrt(fan_in), +...).
    k1, k2, k3, k4 = jax.random.split(key, 4)
    bound1 = 1.0                      # fc1 fan_in = 1
    w1 = jax.random.uniform(k1, (5,), jnp.float32, -bound1, bound1)
    b1 = jax.random.uniform(k2, (5,), jnp.float32, -bound1, bound1)
    bound2 = 1.0 / jnp.sqrt(5.0)      # fc2 fan_in = 5
    w2 = jax.random.uniform(k3, (5,), jnp.float32, -bound2, bound2)
    b2 = jax.random.uniform(k4, (1,), jnp.float32, -bound2, bound2)
    return w1, b1, w2, b2


def _reference(x, w1, b1, w2, b2):
    h = jnp.maximum(x @ w1.reshape(1, 5) + b1.reshape(1, 5), 0.0)
    return h @ w2.reshape(5, 1) + b2.reshape(1, 1)


if __name__ == "__main__":
    key = jax.random.PRNGKey(0)
    kx, kp = jax.random.split(key)
    w1, b1, w2, b2 = init_params(kp)

    # Small batch (single tiny block), consistent with the module's (B, 1) input.
    x_small = jax.random.normal(kx, (8, 1), jnp.float32)
    y_small = net_forward(x_small, w1, b1, w2, b2)
    jax.block_until_ready(y_small)
    assert jnp.allclose(y_small, _reference(x_small, w1, b1, w2, b2),
                        atol=1e-5, rtol=1e-5), "mismatch (small batch)"

    # Larger, non-multiple-of-128 batch with a small block to exercise the
    # multi-block grid + padding path (block_rows=8 -> grid of 4 blocks).
    x_big = jax.random.normal(kx, (4000, 1), jnp.float32)
    y_big = net_forward(x_big, w1, b1, w2, b2, max_block_rows=8)
    jax.block_until_ready(y_big)
    assert jnp.allclose(y_big, _reference(x_big, w1, b1, w2, b2),
                        atol=1e-5, rtol=1e-5), "mismatch (gridded batch)"

    print("KERNEL_OK")
</pallas_src>

<mosaic_0001>
module attributes {stable_mosaic.version = 11 : i64} {
  func.func @mlp_kernel(%arg0: i32, %arg1: memref<8x128xf32, #tpu.memory_space<vmem>>, %arg2: memref<5xf32, #tpu.memory_space<smem>>, %arg3: memref<5xf32, #tpu.memory_space<smem>>, %arg4: memref<5xf32, #tpu.memory_space<smem>>, %arg5: memref<1xf32, #tpu.memory_space<smem>>, %arg6: memref<8x128xf32, #tpu.memory_space<vmem>>) attributes {dimension_semantics = [#tpu.dimension_semantics<parallel>], iteration_bounds = array<i64: 1>, scalar_prefetch = 0 : i64, scratch_operands = 0 : i64, tpu.core_type = #tpu.core_type<tc>, window_params = [{transform_indices = @transform_0, window_bounds = array<i64: 8, 128>}, {transform_indices = @transform_1, window_bounds = array<i64: 5>}, {transform_indices = @transform_2, window_bounds = array<i64: 5>}, {transform_indices = @transform_3, window_bounds = array<i64: 5>}, {transform_indices = @transform_4, window_bounds = array<i64: 1>}, {transform_indices = @transform_5, window_bounds = array<i64: 8, 128>}]} {
    %c0 = arith.constant 0 : index
    %c0_0 = arith.constant 0 : index
    %0 = vector.load %arg1[%c0, %c0_0] : memref<8x128xf32, #tpu.memory_space<vmem>>, vector<8x128xf32>
    %c0_1 = arith.constant 0 : index
    %1 = memref.load %arg2[%c0_1] : memref<5xf32, #tpu.memory_space<smem>>
    %2 = vector.broadcast %1 : f32 to vector<8x128xf32>
    %3 = arith.mulf %0, %2 : vector<8x128xf32>
    %c0_2 = arith.constant 0 : index
    %4 = memref.load %arg3[%c0_2] : memref<5xf32, #tpu.memory_space<smem>>
    %5 = vector.broadcast %4 : f32 to vector<8x128xf32>
    %6 = arith.addf %3, %5 : vector<8x128xf32>
    %cst = arith.constant 0.000000e+00 : f32
    %7 = vector.broadcast %cst : f32 to vector<8x128xf32>
    %8 = arith.maximumf %6, %7 : vector<8x128xf32>
    %c0_3 = arith.constant 0 : index
    %9 = memref.load %arg4[%c0_3] : memref<5xf32, #tpu.memory_space<smem>>
    %10 = vector.broadcast %9 : f32 to vector<8x128xf32>
    %11 = arith.mulf %8, %10 : vector<8x128xf32>
    %c1 = arith.constant 1 : index
    %12 = memref.load %arg2[%c1] : memref<5xf32, #tpu.memory_space<smem>>
    %13 = vector.broadcast %12 : f32 to vector<8x128xf32>
    %14 = arith.mulf %0, %13 : vector<8x128xf32>
    %c1_4 = arith.constant 1 : index
    %15 = memref.load %arg3[%c1_4] : memref<5xf32, #tpu.memory_space<smem>>
    %16 = vector.broadcast %15 : f32 to vector<8x128xf32>
    %17 = arith.addf %14, %16 : vector<8x128xf32>
    %cst_5 = arith.constant 0.000000e+00 : f32
    %18 = vector.broadcast %cst_5 : f32 to vector<8x128xf32>
    %19 = arith.maximumf %17, %18 : vector<8x128xf32>
    %c1_6 = arith.constant 1 : index
    %20 = memref.load %arg4[%c1_6] : memref<5xf32, #tpu.memory_space<smem>>
    %21 = vector.broadcast %20 : f32 to vector<8x128xf32>
    %22 = arith.mulf %19, %21 : vector<8x128xf32>
    %23 = arith.addf %11, %22 : vector<8x128xf32>
    %c2 = arith.constant 2 : index
    %24 = memref.load %arg2[%c2] : memref<5xf32, #tpu.memory_space<smem>>
    %25 = vector.broadcast %24 : f32 to vector<8x128xf32>
    %26 = arith.mulf %0, %25 : vector<8x128xf32>
    %c2_7 = arith.constant 2 : index
    %27 = memref.load %arg3[%c2_7] : memref<5xf32, #tpu.memory_space<smem>>
    %28 = vector.broadcast %27 : f32 to vector<8x128xf32>
    %29 = arith.addf %26, %28 : vector<8x128xf32>
    %cst_8 = arith.constant 0.000000e+00 : f32
    %30 = vector.broadcast %cst_8 : f32 to vector<8x128xf32>
    %31 = arith.maximumf %29, %30 : vector<8x128xf32>
    %c2_9 = arith.constant 2 : index
    %32 = memref.load %arg4[%c2_9] : memref<5xf32, #tpu.memory_space<smem>>
    %33 = vector.broadcast %32 : f32 to vector<8x128xf32>
    %34 = arith.mulf %31, %33 : vector<8x128xf32>
    %35 = arith.addf %23, %34 : vector<8x128xf32>
    %c3 = arith.constant 3 : index
    %36 = memref.load %arg2[%c3] : memref<5xf32, #tpu.memory_space<smem>>
    %37 = vector.broadcast %36 : f32 to vector<8x128xf32>
    %38 = arith.mulf %0, %37 : vector<8x128xf32>
    %c3_10 = arith.constant 3 : index
    %39 = memref.load %arg3[%c3_10] : memref<5xf32, #tpu.memory_space<smem>>
    %40 = vector.broadcast %39 : f32 to vector<8x128xf32>
    %41 = arith.addf %38, %40 : vector<8x128xf32>
    %cst_11 = arith.constant 0.000000e+00 : f32
    %42 = vector.broadcast %cst_11 : f32 to vector<8x128xf32>
    %43 = arith.maximumf %41, %42 : vector<8x128xf32>
    %c3_12 = arith.constant 3 : index
    %44 = memref.load %arg4[%c3_12] : memref<5xf32, #tpu.memory_space<smem>>
    %45 = vector.broadcast %44 : f32 to vector<8x128xf32>
    %46 = arith.mulf %43, %45 : vector<8x128xf32>
    %47 = arith.addf %35, %46 : vector<8x128xf32>
    %c4 = arith.constant 4 : index
    %48 = memref.load %arg2[%c4] : memref<5xf32, #tpu.memory_space<smem>>
    %49 = vector.broadcast %48 : f32 to vector<8x128xf32>
    %50 = arith.mulf %0, %49 : vector<8x128xf32>
    %c4_13 = arith.constant 4 : index
    %51 = memref.load %arg3[%c4_13] : memref<5xf32, #tpu.memory_space<smem>>
    %52 = vector.broadcast %51 : f32 to vector<8x128xf32>
    %53 = arith.addf %50, %52 : vector<8x128xf32>
    %cst_14 = arith.constant 0.000000e+00 : f32
    %54 = vector.broadcast %cst_14 : f32 to vector<8x128xf32>
    %55 = arith.maximumf %53, %54 : vector<8x128xf32>
    %c4_15 = arith.constant 4 : index
    %56 = memref.load %arg4[%c4_15] : memref<5xf32, #tpu.memory_space<smem>>
    %57 = vector.broadcast %56 : f32 to vector<8x128xf32>
    %58 = arith.mulf %55, %57 : vector<8x128xf32>
    %59 = arith.addf %47, %58 : vector<8x128xf32>
    %c0_16 = arith.constant 0 : index
    %60 = memref.load %arg5[%c0_16] : memref<1xf32, #tpu.memory_space<smem>>
    %61 = vector.broadcast %60 : f32 to vector<8x128xf32>
    %62 = arith.addf %59, %61 : vector<8x128xf32>
    %c0_17 = arith.constant 0 : index
    %c0_18 = arith.constant 0 : index
    %63 = vector.load %arg6[%c0_17, %c0_18] : memref<8x128xf32, #tpu.memory_space<vmem>>, vector<8x128xf32>
    tpu.vector_store %arg6[%c0_17, %c0_18], %62 {strides = array<i32>} : memref<8x128xf32, #tpu.memory_space<vmem>>, vector<8x128xf32>,
    return
  }
  func.func @transform_0(%arg0: i32) -> (i32, i32) {
    %c0_i32 = arith.constant 0 : i32
    %c0_i32_0 = arith.constant 0 : i32
    return %arg0, %c0_i32 : i32, i32
  }
  func.func @transform_1(%arg0: i32) -> i32 {
    %c0_i32 = arith.constant 0 : i32
    %c0_i32_0 = arith.constant 0 : i32
    return %c0_i32 : i32
  }
  func.func @transform_2(%arg0: i32) -> i32 {
    %c0_i32 = arith.constant 0 : i32
    %c0_i32_0 = arith.constant 0 : i32
    return %c0_i32 : i32
  }
  func.func @transform_3(%arg0: i32) -> i32 {
    %c0_i32 = arith.constant 0 : i32
    %c0_i32_0 = arith.constant 0 : i32
    return %c0_i32 : i32
  }
  func.func @transform_4(%arg0: i32) -> i32 {
    %c0_i32 = arith.constant 0 : i32
    %c0_i32_0 = arith.constant 0 : i32
    return %c0_i32 : i32
  }
  func.func @transform_5(%arg0: i32) -> (i32, i32) {
    %c0_i32 = arith.constant 0 : i32
    %c0_i32_0 = arith.constant 0 : i32
    return %arg0, %c0_i32 : i32, i32
  }
}

</mosaic_0001>

<llo_original>
// kernel: tpu_custom_call.1
$region0: #{tpu_custom_call.1}
  #allocation0 [shape = 'u32[]', space=smem, size = 0x4, offset = 0x4, fixed_abs, tag = 'smem constant byte address 0x4 - core index']
  #allocation1 [shape = 'u32[72,128]{1,0:T(1,128)}', space=vmem, size = 0x9000, scoped, tag = 'internal scratch']
  #allocation2 [shape = 'f32[1]{0:T(128)S(6)}', space=smem, size = 0x200, scoped, tag = 'scoped memory for tpu_custom_call.1']
  %s0 = inlined_call_operand.hbm [shape: f32[8,128], index: 0, kind: input, shape index: {}]
  %s1 = inlined_call_operand.vmem [shape: f32[5], index: 1, kind: input, shape index: {}]
  %s2 = inlined_call_operand.vmem [shape: f32[5], index: 2, kind: input, shape index: {}]
  %s3 = inlined_call_operand.vmem [shape: f32[5], index: 3, kind: input, shape index: {}]
  %s4 = inlined_call_operand.<no memory space> [shape: f32[1], index: 4, kind: input, shape index: {}]
  %s5 = inlined_call_operand.hbm [shape: f32[8,128], index: 5, kind: output, shape index: {}]
  %s6 = sld [smem:[#allocation0]]
  $region46: #{tpu_custom_call.1} parent=0
    _
  %s8 = ssub.s32 1, %s6
  %s9 = scalar_select 0, %s8, %s6
  %10 = sst [smem:[#allocation2]] %s4
  $region1: #{tpu_custom_call.1} parent=0
    #allocation3 [shape = 'u8[4096]{0}', space=vmem, size = 0x1000, scoped, tag = 'input window, operand 0, single buffered']
    #allocation4 [shape = 's32[1]{0}', space=sflag, size = 0x4, scoped, tag = 'scoped memory for tpu_custom_call.1']
    #allocation5 [shape = 's32[1]{0}', space=sflag, size = 0x4, scoped, tag = 'scoped memory for tpu_custom_call.1']
    #allocation6 [shape = 's32[1]{0}', space=sflag, size = 0x4, scoped, tag = 'scoped memory for tpu_custom_call.1']
    #allocation7 [shape = 'u8[512]{0}', space=smem, size = 0x200, scoped, tag = 'input window, operand 1, single buffered']
    #allocation8 [shape = 'u8[512]{0}', space=smem, size = 0x200, scoped, tag = 'input window, operand 2, single buffered']
    #allocation9 [shape = 's32[1]{0}', space=sflag, size = 0x4, scoped, tag = 'scoped memory for tpu_custom_call.1']
    #allocation10 [shape = 'u8[512]{0}', space=smem, size = 0x200, scoped, tag = 'input window, operand 3, single buffered']
    #allocation11 [shape = 'u8[4096]{0}', space=vmem, size = 0x1000, scoped, tag = 'output window, operand 0, single buffered']
    %11 = vsyncpa [#allocation4], 0
    %12 = vsyncpa [#allocation6], 0
    %13 = vsyncpa [#allocation9], 0
    %14 = vsyncpa [#allocation5], 0
    // Predicated region
    $region2: #{tpu_custom_call.1} parent=1 // pred_check
      _
    $region3: #{tpu_custom_call.1} parent=1 // pred_check_branch
      %16 = sbr.rel (0) target = $region5
    $region4: #{tpu_custom_call.1} parent=1 // pred_region
      %18 = vsyncadd [#allocation4], 0
      %s20 = sshll.u32 %s0, 4
      %s21 = int_to_ptr.hbm [resolvable:$true] %s20
      %s22 = sshll.u32 [#allocation3], 4
      %s23 = int_to_ptr.vmem [resolvable:$true] %s22
      %25 = dma.hbm_to_vmem [thread:$0]  %s21, 128, %s23, [#allocation4]
    $region5: #{tpu_custom_call.1} parent=1 // pred_fallthru
      _
    // Predicated region
    $region6: #{tpu_custom_call.1} parent=1 // pred_check
      _
    $region7: #{tpu_custom_call.1} parent=1 // pred_check_branch
      %27 = sbr.rel (0) target = $region9
    $region8: #{tpu_custom_call.1} parent=1 // pred_region
      %29 = vsyncadd [#allocation6], 0
      %s31 = sshll.u32 %s1, 4
      %s32 = int_to_ptr.vmem [resolvable:$true] %s31
      %34 = dma.vmem_to_smem %s32, 16, [#allocation7], [#allocation6]
    $region9: #{tpu_custom_call.1} parent=1 // pred_fallthru
      _
    // Predicated region
    $region10: #{tpu_custom_call.1} parent=1 // pred_check
      _
    $region11: #{tpu_custom_call.1} parent=1 // pred_check_branch
      %36 = sbr.rel (0) target = $region13
    $region12: #{tpu_custom_call.1} parent=1 // pred_region
      %38 = vsyncadd [#allocation9], 0
      %s40 = sshll.u32 %s2, 4
      %s41 = int_to_ptr.vmem [resolvable:$true] %s40
      %43 = dma.vmem_to_smem %s41, 16, [#allocation8], [#allocation9]
    $region13: #{tpu_custom_call.1} parent=1 // pred_fallthru
      _
    // Predicated region
    $region14: #{tpu_custom_call.1} parent=1 // pred_check
      _
    $region15: #{tpu_custom_call.1} parent=1 // pred_check_branch
      %45 = sbr.rel (0) target = $region17
    $region16: #{tpu_custom_call.1} parent=1 // pred_region
      %47 = vsyncadd [#allocation9], 0
      %s49 = sshll.u32 %s3, 4
      %s50 = int_to_ptr.vmem [resolvable:$true] %s49
      %52 = dma.vmem_to_smem %s50, 16, [#allocation10], [#allocation9]
    $region17: #{tpu_custom_call.1} parent=1 // pred_fallthru
      _
    // Predicated region
    $region18: #{tpu_custom_call.1} parent=1 // pred_check
      _
    $region19: #{tpu_custom_call.1} parent=1 // pred_check_branch
      %54 = sbr.rel (0) target = $region21
    $region20: #{tpu_custom_call.1} parent=1 // pred_region
      _
    $region21: #{tpu_custom_call.1} parent=1 // pred_fallthru
      _
    // Predicated region
    $region22: #{tpu_custom_call.1} parent=1 // pred_check
      _
    $region23: #{tpu_custom_call.1} parent=1 // pred_check_branch
      %56 = sbr.rel (0) target = $region25
    $region24: #{tpu_custom_call.1} parent=1 // pred_region
      %58 = dma.done [#allocation4], 128
    $region25: #{tpu_custom_call.1} parent=1 // pred_fallthru
      _
    // Predicated region
    $region26: #{tpu_custom_call.1} parent=1 // pred_check
      _
    $region27: #{tpu_custom_call.1} parent=1 // pred_check_branch
      %60 = sbr.rel (0) target = $region29
    $region28: #{tpu_custom_call.1} parent=1 // pred_region
      %62 = dma.done [#allocation6], 16
    $region29: #{tpu_custom_call.1} parent=1 // pred_fallthru
      _
    // Predicated region
    $region30: #{tpu_custom_call.1} parent=1 // pred_check
      _
    $region31: #{tpu_custom_call.1} parent=1 // pred_check_branch
      %64 = sbr.rel (0) target = $region33
    $region32: #{tpu_custom_call.1} parent=1 // pred_region
      %66 = dma.done [#allocation9], 16
    $region33: #{tpu_custom_call.1} parent=1 // pred_fallthru
      _
    // Predicated region
    $region34: #{tpu_custom_call.1} parent=1 // pred_check
      _
    $region35: #{tpu_custom_call.1} parent=1 // pred_check_branch
      %68 = sbr.rel (0) target = $region37
    $region36: #{tpu_custom_call.1} parent=1 // pred_region
      %70 = dma.done [#allocation9], 16
    $region37: #{tpu_custom_call.1} parent=1 // pred_fallthru
      _
    %71 = sfence
    %v72 = vld [vmem:[#allocation3] sm:$0xff]
    %s73 = sld [smem:[#allocation7]]
    %v74 = vstv %s73
    %v75 = vmul.f32 %v72, %v74
    %s76 = sld [smem:[#allocation8]]
    %v77 = vstv %s76
    %v78 = vadd.f32 %v75, %v77
    %v79 = vmax.f32 %v78, 0.0
    %s80 = sld [smem:[#allocation10]]
    %v81 = vstv %s80
    %v82 = vmul.f32 %v79, %v81
    %s83 = sld [smem:[#allocation7 + $0x1]]
    %v84 = vstv %s83
    %v85 = vmul.f32 %v72, %v84
    %s86 = sld [smem:[#allocation8 + $0x1]]
    %v87 = vstv %s86
    %v88 = vadd.f32 %v85, %v87
    %v89 = vmax.f32 %v88, 0.0
    %s90 = sld [smem:[#allocation10 + $0x1]]
    %v91 = vstv %s90
    %v92 = vmul.f32 %v89, %v91
    %v93 = vadd.f32 %v82, %v92
    %s94 = sld [smem:[#allocation7 + $0x2]]
    %v95 = vstv %s94
    %v96 = vmul.f32 %v72, %v95
    %s97 = sld [smem:[#allocation8 + $0x2]]
    %v98 = vstv %s97
    %v99 = vadd.f32 %v96, %v98
    %v100 = vmax.f32 %v99, 0.0
    %s101 = sld [smem:[#allocation10 + $0x2]]
    %v102 = vstv %s101
    %v103 = vmul.f32 %v100, %v102
    %v104 = vadd.f32 %v93, %v103
    %s105 = sld [smem:[#allocation7 + $0x3]]
    %v106 = vstv %s105
    %v107 = vmul.f32 %v72, %v106
    %s108 = sld [smem:[#allocation8 + $0x3]]
    %v109 = vstv %s108
    %v110 = vadd.f32 %v107, %v109
    %v111 = vmax.f32 %v110, 0.0
    %s112 = sld [smem:[#allocation10 + $0x3]]
    %v113 = vstv %s112
    %v114 = vmul.f32 %v111, %v113
    %v115 = vadd.f32 %v104, %v114
    %s116 = sld [smem:[#allocation7 + $0x4]]
    %v117 = vstv %s116
    %v118 = vmul.f32 %v72, %v117
    %s119 = sld [smem:[#allocation8 + $0x4]]
    %v120 = vstv %s119
    %v121 = vadd.f32 %v118, %v120
    %v122 = vmax.f32 %v121, 0.0
    %s123 = sld [smem:[#allocation10 + $0x4]]
    %v124 = vstv %s123
    %v125 = vmul.f32 %v122, %v124
    %v126 = vadd.f32 %v115, %v125
    %s127 = sld [smem:[#allocation2]]
    %v128 = vstv %s127
    %v129 = vadd.f32 %v126, %v128
    %130 = vst [vmem:[#allocation11] sm:$0xff] %v129
    // Predicated region
    $region38: #{tpu_custom_call.1} parent=1 // pred_check
      _
    $region39: #{tpu_custom_call.1} parent=1 // pred_check_branch
      %132 = sbr.rel (0) target = $region41
    $region40: #{tpu_custom_call.1} parent=1 // pred_region
      %134 = vsyncadd [#allocation5], 0
      %s136 = sshll.u32 [#allocation11], 4
      %s137 = int_to_ptr.vmem [resolvable:$true] %s136
      %s138 = sshll.u32 %s5, 4
      %s139 = int_to_ptr.hbm [resolvable:$true] %s138
      %141 = dma.vmem_to_hbm [thread:$0]  %s137, 128, %s139, [#allocation5]
    $region41: #{tpu_custom_call.1} parent=1 // pred_fallthru
      _
    // Predicated region
    $region42: #{tpu_custom_call.1} parent=1 // pred_check
      _
    $region43: #{tpu_custom_call.1} parent=1 // pred_check_branch
      %143 = sbr.rel (0) target = $region45
    $region44: #{tpu_custom_call.1} parent=1 // pred_region
      %145 = dma.done [#allocation5], 128
    $region45: #{tpu_custom_call.1} parent=1 // pred_fallthru
      _
    %146 = vsyncpa [#allocation4], 1
    %147 = vsyncpa [#allocation5], 1
    %148 = vsyncpa [#allocation6], 1
    %149 = vsyncpa [#allocation9], 1

</llo_original>
